<compile_context>
chip_gen: v6e
topology: v6e:2x2x1
jax: 0.10.0
libtpu: 0.0.40
codegen_flags: <defaults>
</compile_context>

<pallas_src>
import functools

import numpy as np
import jax
import jax.numpy as jnp
from jax.experimental import pallas as pl
from jax.experimental.pallas import tpu as pltpu


# ----------------------------------------------------------------------------
# Kernel A: batched per-point voxelization (elementwise, lane-dense layout).
#   pts_ref : (C, N) f32  (points along the 128-lane axis)
#   out_ref : (8, N) i32  rows = [cx, cy, cz, valid, flat_id, 0, 0, 0]
# ----------------------------------------------------------------------------
def _voxelize_kernel(pts_ref, out_ref, *, x0, y0, z0, vx, vy, vz, gx, gy, gz):
    x = pts_ref[0:1, :]
    y = pts_ref[1:2, :]
    z = pts_ref[2:3, :]
    cx = jnp.floor((x - x0) / vx)
    cy = jnp.floor((y - y0) / vy)
    cz = jnp.floor((z - z0) / vz)
    ok = ((cx >= 0.0) & (cx < float(gx)) &
          (cy >= 0.0) & (cy < float(gy)) &
          (cz >= 0.0) & (cz < float(gz)))
    cxi = cx.astype(jnp.int32)
    cyi = cy.astype(jnp.int32)
    czi = cz.astype(jnp.int32)
    fid = czi * (gy * gx) + cyi * gx + cxi          # only consumed where ok==1
    out_ref[0:1, :] = cxi
    out_ref[1:2, :] = cyi
    out_ref[2:3, :] = czi
    out_ref[3:4, :] = ok.astype(jnp.int32)
    out_ref[4:5, :] = fid
    out_ref[5:8, :] = jnp.zeros((3, cxi.shape[1]), jnp.int32)


# ----------------------------------------------------------------------------
# Kernel B: scatter points into pillar slots.  The one-hot is built ON-CHIP
# from a (1, N) int32 slot vector (sentinel == num_slots selects no row), so
# the only HBM inputs are the slot vector and the raw points.
#   slot_ref : (1, N)  i32     pts_ref : (N, C) f32     out_ref : (PS, C) f32
# ----------------------------------------------------------------------------
def _scatter_kernel(slot_ref, pts_ref, out_ref, *, num_slots):
    slot = slot_ref[...]                                        # (1, N)
    n = slot.shape[1]
    row_ids = jax.lax.broadcasted_iota(jnp.int32, (num_slots, n), 0)
    w = (row_ids == slot).astype(jnp.float32)                   # (PS, N) on-chip
    out_ref[...] = jnp.dot(w, pts_ref[...], preferred_element_type=jnp.float32)
    # TODO(synk): at production scale (P~16-40K, N~20K+) replace this on-chip
    # one-hot matmul with a DMA / dynamic gather driven by a scalar-prefetched
    # slot table; the (PS, N) one-hot no longer fits VMEM at that size.


class PillarLayer:
    def __init__(self, voxel_size, point_cloud_range, max_num_points, max_voxels):
        self.voxel_size = [float(v) for v in voxel_size]
        self.pcr = [float(v) for v in point_cloud_range]
        self.max_num_points = int(max_num_points)
        self.max_voxels = int(max_voxels)
        vx, vy, vz = self.voxel_size
        x0, y0, z0, x1, y1, z1 = self.pcr
        self.grid = (int(round((x1 - x0) / vx)),
                     int(round((y1 - y0) / vy)),
                     int(round((z1 - z0) / vz)))
        self._pipeline = jax.jit(self._pipeline_impl)

    # ---------------- glue: sort-based first-occurrence dedup (per sample) ----
    def _dedup_one(self, packed):
        # packed: (8, N) i32 rows = [cx, cy, cz, valid, flat_id, ...]
        P, S = self.max_voxels, self.max_num_points
        PS = P * S
        cx, cy, cz = packed[0], packed[1], packed[2]
        valid = packed[3] > 0
        fid = packed[4]
        N = fid.shape[0]
        big = jnp.int32(2 ** 30)

        key = jnp.where(valid, fid, big)
        order = jnp.argsort(key, stable=True).astype(jnp.int32)
        skey = key[order]
        pos = jnp.arange(N, dtype=jnp.int32)
        is_new = jnp.concatenate(
            [jnp.ones((1,), jnp.bool_), skey[1:] != skey[:-1]])
        seg_start = jax.lax.cummax(jnp.where(is_new, pos, 0), axis=0)
        point_slot_sorted = pos - seg_start           # within-voxel arrival rank
        first_idx_sorted = order[seg_start]           # original idx of voxel's first point
        # scatter back to original point order
        first_idx = jnp.zeros((N,), jnp.int32).at[order].set(first_idx_sorted)
        point_slot = jnp.zeros((N,), jnp.int32).at[order].set(point_slot_sorted)

        is_first = valid & (first_idx == pos)
        # pillar index == first-occurrence rank (matches reference overflow-drop order)
        slot_at_first = jnp.cumsum(is_first.astype(jnp.int32)) - 1
        pillar_slot = jnp.where(valid, slot_at_first[first_idx], P)
        stored = valid & (pillar_slot < P) & (point_slot < S)
        flat_slot = jnp.where(stored, pillar_slot * S + point_slot, PS).astype(jnp.int32)

        # per-pillar counts: O(N) scatter-add (index P is a discard bucket)
        counts = jnp.zeros((P + 1,), jnp.int32).at[
            jnp.where(stored, pillar_slot, P)].add(1)[:P]

        # pillar voxel coords = coords of the pillar's first point
        # (index P collects all the "not a kept first point" writes; sliced off)
        target = jnp.where(is_first & (slot_at_first < P), slot_at_first, P)
        pillar_point_idx = jnp.zeros((P + 1,), jnp.int32).at[target].set(pos)[:P]
        coords_all = jnp.stack([cx, cy, cz], axis=1)              # (N, 3) = (cx, cy, cz)
        pillar_coords = coords_all[pillar_point_idx]

        num_valid = jnp.minimum(jnp.sum(is_first.astype(jnp.int32)), P).astype(jnp.int32)
        return flat_slot, pillar_coords.astype(jnp.int32), counts, num_valid

    # ---------------- batched pipeline (jittable, static shapes) --------------
    def _pipeline_impl(self, pts_b):
        B, N, C = pts_b.shape
        P, S = self.max_voxels, self.max_num_points
        PS = P * S
        gx, gy, gz = self.grid
        vx, vy, vz = self.voxel_size
        x0, y0, z0 = self.pcr[0], self.pcr[1], self.pcr[2]

        # ---- Kernel A: batched voxelize, lane-dense packed output ------------
        vox_kernel = functools.partial(
            _voxelize_kernel, x0=x0, y0=y0, z0=z0, vx=vx, vy=vy, vz=vz,
            gx=gx, gy=gy, gz=gz)
        pts_cn = jnp.transpose(pts_b, (0, 2, 1))      # (B, C, N): points on lane axis
        packed = pl.pallas_call(
            vox_kernel,
            grid=(B,),
            in_specs=[pl.BlockSpec((None, C, N), lambda b: (b, 0, 0))],
            out_specs=pl.BlockSpec((None, 8, N), lambda b: (b, 0, 0)),
            out_shape=jax.ShapeDtypeStruct((B, 8, N), jnp.int32),
            compiler_params=pltpu.CompilerParams(
                dimension_semantics=("parallel",)),
        )(pts_cn)

        # ---- Glue: sort-based dedup, coords, counts ---------------------------
        flat_slot, pillar_coords, counts, num_valid = jax.vmap(self._dedup_one)(packed)

        # ---- Kernel B: on-chip one-hot + MXU scatter --------------------------
        scat_kernel = functools.partial(_scatter_kernel, num_slots=PS)
        pillars_flat = pl.pallas_call(
            scat_kernel,
            grid=(B,),
            in_specs=[pl.BlockSpec((None, 1, N), lambda b: (b, 0, 0)),
                      pl.BlockSpec((None, N, C), lambda b: (b, 0, 0))],
            out_specs=pl.BlockSpec((None, PS, C), lambda b: (b, 0, 0)),
            out_shape=jax.ShapeDtypeStruct((B, PS, C), jnp.float32),
            compiler_params=pltpu.CompilerParams(
                dimension_semantics=("parallel",)),
        )(flat_slot.reshape(B, 1, N), pts_b)

        pillars = pillars_flat.reshape(B, P, S, C)
        return pillars, pillar_coords, counts, num_valid

    # ---------------- helpers --------------------------------------------------
    def _stack_points(self, pts_list):
        arrs = [np.asarray(p, dtype=np.float32) for p in pts_list]
        max_n = max(a.shape[0] for a in arrs)
        c = arrs[0].shape[1]
        pad_val = self.pcr[0] - 10.0 * self.voxel_size[0]   # out of range -> invalid
        out = np.full((len(arrs), max_n, c), pad_val, dtype=np.float32)
        for i, a in enumerate(arrs):
            out[i, : a.shape[0]] = a
        return jnp.asarray(out)

    # ---------------- forward (matches PyTorch semantics) ----------------------
    def forward(self, batched_pts, batched_pts_ori):
        # TODO(synk): the total pillar count is data-dependent; the variable-length
        # slice + concat is done host-side after one fixed-shape batched pipeline
        # (single device->host sync, plus one optional fallback pass).
        bs = len(batched_pts)
        pil_d, co_d, cn_d, nv_d = self._pipeline(self._stack_points(batched_pts))
        pillars = np.asarray(pil_d)
        coords = np.asarray(co_d)
        counts = np.asarray(cn_d)
        nv = np.asarray(nv_d)

        fallback = None
        if np.any(nv == 0):
            fb = self._pipeline(self._stack_points(batched_pts_ori))
            fallback = tuple(np.asarray(a) for a in fb)

        pillars_list, coors_list, npts_list = [], [], []
        for i in range(bs):
            if fallback is not None and nv[i] == 0:
                pil_i, co_i, cn_i = fallback[0][i], fallback[1][i], fallback[2][i]
                k = int(fallback[3][i])
            else:
                pil_i, co_i, cn_i, k = pillars[i], coords[i], counts[i], int(nv[i])
            pillars_list.append(pil_i[:k])
            coors_list.append(np.concatenate(
                [np.full((k, 1), i, dtype=np.int32), co_i[:k]], axis=1))
            npts_list.append(cn_i[:k])

        return (jnp.asarray(np.concatenate(pillars_list, axis=0)),
                jnp.asarray(np.concatenate(coors_list, axis=0)),
                jnp.asarray(np.concatenate(npts_list, axis=0)))

    __call__ = forward


if __name__ == "__main__":
    key = jax.random.PRNGKey(0)
    bs, N, C = 2, 256, 4
    voxel_size = [0.5, 0.5, 4.0]
    point_cloud_range = [0.0, 0.0, -2.0, 8.0, 8.0, 2.0]
    max_num_points = 8
    max_voxels = 32

    keys = jax.random.split(key, bs)
    batched_pts = []
    for k in keys:
        kxy, kz, ki = jax.random.split(k, 3)
        xy = jax.random.uniform(kxy, (N, 2), minval=-1.0, maxval=9.0)   # some out of range
        z = jax.random.uniform(kz, (N, 1), minval=-3.0, maxval=3.0)
        inten = jax.random.uniform(ki, (N, 1))
        batched_pts.append(jnp.concatenate([xy, z, inten], axis=1).astype(jnp.float32))
    batched_pts_ori = [p for p in batched_pts]

    layer = PillarLayer(voxel_size, point_cloud_range, max_num_points, max_voxels)
    pillars, coors_batch, npoints_per_pillar = layer(batched_pts, batched_pts_ori)
    jax.block_until_ready((pillars, coors_batch, npoints_per_pillar))

    # light sanity checks
    assert pillars.shape[1:] == (max_num_points, C)
    assert coors_batch.shape == (pillars.shape[0], 4)
    assert npoints_per_pillar.shape == (pillars.shape[0],)
    assert int(jnp.min(npoints_per_pillar)) >= 1
    assert int(jnp.max(npoints_per_pillar)) <= max_num_points
    gx, gy, gz = layer.grid
    assert int(jnp.min(coors_batch[:, 1])) >= 0 and int(jnp.max(coors_batch[:, 1])) < gx
    assert int(jnp.min(coors_batch[:, 2])) >= 0 and int(jnp.max(coors_batch[:, 2])) < gy
    assert int(jnp.min(coors_batch[:, 3])) >= 0 and int(jnp.max(coors_batch[:, 3])) < gz

    print("KERNEL_OK")
</pallas_src>

<mosaic_0001>
module attributes {stable_mosaic.version = 11 : i64} {
  func.func private @main(%arg0: i32) attributes {dimension_semantics = [#tpu.dimension_semantics<core_parallel>], iteration_bounds = array<i64: 2>, tpu.core_type = #tpu.core_type<sc_scalar_subcore>, window_params = []} {
    return
  }
}

module attributes {stable_mosaic.version = 11 : i64} {
  func.func private @main(%arg0: i32) attributes {dimension_semantics = [#tpu.dimension_semantics<core_parallel>], iteration_bounds = array<i64: 2>, tpu.core_type = #tpu.core_type<sc_scalar_subcore>, window_params = []} {
    return
  }
}

module attributes {stable_mosaic.version = 11 : i64} {
  func.func @_voxelize_kernel(%arg0: i32, %arg1: memref<1x4x256xf32, #tpu.memory_space<vmem>>, %arg2: memref<1x8x256xi32, #tpu.memory_space<vmem>>) attributes {dimension_semantics = [#tpu.dimension_semantics<parallel>], iteration_bounds = array<i64: 2>, scalar_prefetch = 0 : i64, scratch_operands = 0 : i64, tpu.core_type = #tpu.core_type<tc>, window_params = [{transform_indices = @transform_0, window_bounds = array<i64: 1, 4, 256>}, {transform_indices = @transform_1, window_bounds = array<i64: 1, 8, 256>}]} {
    %c0 = arith.constant 0 : index
    %c0_0 = arith.constant 0 : index
    %c0_1 = arith.constant 0 : index
    %0 = vector.load %arg1[%c0, %c0_0, %c0_1] : memref<1x4x256xf32, #tpu.memory_space<vmem>>, vector<1x1x256xf32>
    %1 = vector.shape_cast %0 : vector<1x1x256xf32> to vector<1x256xf32>
    %c0_2 = arith.constant 0 : index
    %c1 = arith.constant 1 : index
    %c0_3 = arith.constant 0 : index
    %2 = vector.load %arg1[%c0_2, %c1, %c0_3] : memref<1x4x256xf32, #tpu.memory_space<vmem>>, vector<1x1x256xf32>
    %3 = vector.shape_cast %2 : vector<1x1x256xf32> to vector<1x256xf32>
    %c0_4 = arith.constant 0 : index
    %c2 = arith.constant 2 : index
    %c0_5 = arith.constant 0 : index
    %4 = vector.load %arg1[%c0_4, %c2, %c0_5] : memref<1x4x256xf32, #tpu.memory_space<vmem>>, vector<1x1x256xf32>
    %5 = vector.shape_cast %4 : vector<1x1x256xf32> to vector<1x256xf32>
    %cst = arith.constant 0.000000e+00 : f32
    %6 = vector.broadcast %cst : f32 to vector<1x256xf32>
    %7 = arith.subf %1, %6 : vector<1x256xf32>
    %cst_6 = arith.constant 5.000000e-01 : f32
    %8 = vector.broadcast %cst_6 : f32 to vector<1x256xf32>
    %9 = arith.divf %7, %8 : vector<1x256xf32>
    %10 = math.floor %9 : vector<1x256xf32>
    %cst_7 = arith.constant 0.000000e+00 : f32
    %11 = vector.broadcast %cst_7 : f32 to vector<1x256xf32>
    %12 = arith.subf %3, %11 : vector<1x256xf32>
    %cst_8 = arith.constant 5.000000e-01 : f32
    %13 = vector.broadcast %cst_8 : f32 to vector<1x256xf32>
    %14 = arith.divf %12, %13 : vector<1x256xf32>
    %15 = math.floor %14 : vector<1x256xf32>
    %cst_9 = arith.constant -2.000000e+00 : f32
    %16 = vector.broadcast %cst_9 : f32 to vector<1x256xf32>
    %17 = arith.subf %5, %16 : vector<1x256xf32>
    %cst_10 = arith.constant 4.000000e+00 : f32
    %18 = vector.broadcast %cst_10 : f32 to vector<1x256xf32>
    %19 = arith.divf %17, %18 : vector<1x256xf32>
    %20 = math.floor %19 : vector<1x256xf32>
    %cst_11 = arith.constant 0.000000e+00 : f32
    %21 = vector.broadcast %cst_11 : f32 to vector<1x256xf32>
    %22 = arith.cmpf oge, %10, %21 : vector<1x256xf32>
    %cst_12 = arith.constant 1.600000e+01 : f32
    %23 = vector.broadcast %cst_12 : f32 to vector<1x256xf32>
    %24 = arith.cmpf olt, %10, %23 : vector<1x256xf32>
    %25 = arith.andi %22, %24 : vector<1x256xi1>
    %cst_13 = arith.constant 0.000000e+00 : f32
    %26 = vector.broadcast %cst_13 : f32 to vector<1x256xf32>
    %27 = arith.cmpf oge, %15, %26 : vector<1x256xf32>
    %28 = arith.andi %25, %27 : vector<1x256xi1>
    %cst_14 = arith.constant 1.600000e+01 : f32
    %29 = vector.broadcast %cst_14 : f32 to vector<1x256xf32>
    %30 = arith.cmpf olt, %15, %29 : vector<1x256xf32>
    %31 = arith.andi %28, %30 : vector<1x256xi1>
    %cst_15 = arith.constant 0.000000e+00 : f32
    %32 = vector.broadcast %cst_15 : f32 to vector<1x256xf32>
    %33 = arith.cmpf oge, %20, %32 : vector<1x256xf32>
    %34 = arith.andi %31, %33 : vector<1x256xi1>
    %cst_16 = arith.constant 1.000000e+00 : f32
    %35 = vector.broadcast %cst_16 : f32 to vector<1x256xf32>
    %36 = arith.cmpf olt, %20, %35 : vector<1x256xf32>
    %37 = arith.andi %34, %36 : vector<1x256xi1>
    %38 = arith.fptosi %10 : vector<1x256xf32> to vector<1x256xi32>
    %39 = arith.fptosi %15 : vector<1x256xf32> to vector<1x256xi32>
    %40 = arith.fptosi %20 : vector<1x256xf32> to vector<1x256xi32>
    %c256_i32 = arith.constant 256 : i32
    %41 = vector.broadcast %c256_i32 : i32 to vector<1x256xi32>
    %42 = arith.muli %40, %41 : vector<1x256xi32>
    %c16_i32 = arith.constant 16 : i32
    %43 = vector.broadcast %c16_i32 : i32 to vector<1x256xi32>
    %44 = arith.muli %39, %43 : vector<1x256xi32>
    %45 = arith.addi %42, %44 : vector<1x256xi32>
    %46 = arith.addi %45, %38 : vector<1x256xi32>
    %c0_17 = arith.constant 0 : index
    %c0_18 = arith.constant 0 : index
    %c0_19 = arith.constant 0 : index
    %47 = vector.load %arg2[%c0_17, %c0_18, %c0_19] : memref<1x8x256xi32, #tpu.memory_space<vmem>>, vector<1x1x256xi32>
    %48 = vector.shape_cast %47 : vector<1x1x256xi32> to vector<1x256xi32>
    %49 = vector.shape_cast %38 : vector<1x256xi32> to vector<1x1x256xi32>
    tpu.vector_store %arg2[%c0_17, %c0_18, %c0_19], %49 {strides = array<i32>} : memref<1x8x256xi32, #tpu.memory_space<vmem>>, vector<1x1x256xi32>,
    %c0_20 = arith.constant 0 : index
    %c1_21 = arith.constant 1 : index
    %c0_22 = arith.constant 0 : index
    %50 = vector.load %arg2[%c0_20, %c1_21, %c0_22] : memref<1x8x256xi32, #tpu.memory_space<vmem>>, vector<1x1x256xi32>
    %51 = vector.shape_cast %50 : vector<1x1x256xi32> to vector<1x256xi32>
    %52 = vector.shape_cast %39 : vector<1x256xi32> to vector<1x1x256xi32>
    tpu.vector_store %arg2[%c0_20, %c1_21, %c0_22], %52 {strides = array<i32>} : memref<1x8x256xi32, #tpu.memory_space<vmem>>, vector<1x1x256xi32>,
    %c0_23 = arith.constant 0 : index
    %c2_24 = arith.constant 2 : index
    %c0_25 = arith.constant 0 : index
    %53 = vector.load %arg2[%c0_23, %c2_24, %c0_25] : memref<1x8x256xi32, #tpu.memory_space<vmem>>, vector<1x1x256xi32>
    %54 = vector.shape_cast %53 : vector<1x1x256xi32> to vector<1x256xi32>
    %55 = vector.shape_cast %40 : vector<1x256xi32> to vector<1x1x256xi32>
    tpu.vector_store %arg2[%c0_23, %c2_24, %c0_25], %55 {strides = array<i32>} : memref<1x8x256xi32, #tpu.memory_space<vmem>>, vector<1x1x256xi32>,
    %56 = arith.extui %37 : vector<1x256xi1> to vector<1x256xi32>
    %c0_26 = arith.constant 0 : index
    %c3 = arith.constant 3 : index
    %c0_27 = arith.constant 0 : index
    %57 = vector.load %arg2[%c0_26, %c3, %c0_27] : memref<1x8x256xi32, #tpu.memory_space<vmem>>, vector<1x1x256xi32>
    %58 = vector.shape_cast %57 : vector<1x1x256xi32> to vector<1x256xi32>
    %59 = vector.shape_cast %56 : vector<1x256xi32> to vector<1x1x256xi32>
    tpu.vector_store %arg2[%c0_26, %c3, %c0_27], %59 {strides = array<i32>} : memref<1x8x256xi32, #tpu.memory_space<vmem>>, vector<1x1x256xi32>,
    %c0_28 = arith.constant 0 : index
    %c4 = arith.constant 4 : index
    %c0_29 = arith.constant 0 : index
    %60 = vector.load %arg2[%c0_28, %c4, %c0_29] : memref<1x8x256xi32, #tpu.memory_space<vmem>>, vector<1x1x256xi32>
    %61 = vector.shape_cast %60 : vector<1x1x256xi32> to vector<1x256xi32>
    %62 = vector.shape_cast %46 : vector<1x256xi32> to vector<1x1x256xi32>
    tpu.vector_store %arg2[%c0_28, %c4, %c0_29], %62 {strides = array<i32>} : memref<1x8x256xi32, #tpu.memory_space<vmem>>, vector<1x1x256xi32>,
    %c0_i32 = arith.constant 0 : i32
    %63 = vector.broadcast %c0_i32 : i32 to vector<3x256xi32>
    %c0_30 = arith.constant 0 : index
    %c5 = arith.constant 5 : index
    %c0_31 = arith.constant 0 : index
    %64 = vector.load %arg2[%c0_30, %c5, %c0_31] : memref<1x8x256xi32, #tpu.memory_space<vmem>>, vector<1x3x256xi32>
    %65 = vector.shape_cast %64 : vector<1x3x256xi32> to vector<3x256xi32>
    %66 = vector.shape_cast %63 : vector<3x256xi32> to vector<1x3x256xi32>
    tpu.vector_store %arg2[%c0_30, %c5, %c0_31], %66 {strides = array<i32>} : memref<1x8x256xi32, #tpu.memory_space<vmem>>, vector<1x3x256xi32>,
    return
  }
  func.func @transform_0(%arg0: i32) -> (i32, i32, i32) {
    %c0_i32 = arith.constant 0 : i32
    %c0_i32_0 = arith.constant 0 : i32
    %c0_i32_1 = arith.constant 0 : i32
    return %arg0, %c0_i32, %c0_i32_0 : i32, i32, i32
  }
  func.func @transform_1(%arg0: i32) -> (i32, i32, i32) {
    %c0_i32 = arith.constant 0 : i32
    %c0_i32_0 = arith.constant 0 : i32
    %c0_i32_1 = arith.constant 0 : i32
    return %arg0, %c0_i32, %c0_i32_0 : i32, i32, i32
  }
}

module attributes {stable_mosaic.version = 11 : i64} {
  func.func @_scatter_kernel(%arg0: i32, %arg1: memref<1x1x256xi32, #tpu.memory_space<vmem>>, %arg2: memref<1x256x4xf32, #tpu.memory_space<vmem>>, %arg3: memref<1x256x4xf32, #tpu.memory_space<vmem>>) attributes {dimension_semantics = [#tpu.dimension_semantics<parallel>], iteration_bounds = array<i64: 2>, scalar_prefetch = 0 : i64, scratch_operands = 0 : i64, tpu.core_type = #tpu.core_type<tc>, window_params = [{transform_indices = @transform_0, window_bounds = array<i64: 1, 1, 256>}, {transform_indices = @transform_1, window_bounds = array<i64: 1, 256, 4>}, {transform_indices = @transform_2, window_bounds = array<i64: 1, 256, 4>}]} {
    %c0 = arith.constant 0 : index
    %c0_0 = arith.constant 0 : index
    %c0_1 = arith.constant 0 : index
    %0 = vector.load %arg1[%c0, %c0_0, %c0_1] : memref<1x1x256xi32, #tpu.memory_space<vmem>>, vector<1x1x256xi32>
    %1 = vector.shape_cast %0 : vector<1x1x256xi32> to vector<1x256xi32>
    %2 = tpu.iota {dimensions = array<i32: 0>} : vector<256x256xi32>
    %3 = vector.broadcast %1 : vector<1x256xi32> to vector<256x256xi32>
    %4 = arith.cmpi eq, %2, %3 : vector<256x256xi32>
    %5 = arith.extui %4 : vector<256x256xi1> to vector<256x256xi32>
    %6 = arith.sitofp %5 : vector<256x256xi32> to vector<256x256xf32>
    %c0_2 = arith.constant 0 : index
    %c0_3 = arith.constant 0 : index
    %c0_4 = arith.constant 0 : index
    %7 = vector.load %arg2[%c0_2, %c0_3, %c0_4] : memref<1x256x4xf32, #tpu.memory_space<vmem>>, vector<1x256x4xf32>
    %8 = vector.shape_cast %7 : vector<1x256x4xf32> to vector<256x4xf32>
    %cst = arith.constant dense<0.000000e+00> : vector<256x4xf32>
    %9 = tpu.matmul %6, %8, %cst {dimension_numbers = #tpu.dot_dimension_numbers<[1], [0], [0], [1], [0, 0, 1, 1], [], []>} : vector<256x256xf32>, vector<256x4xf32>, vector<256x4xf32> -> vector<256x4xf32>
    %c0_5 = arith.constant 0 : index
    %c0_6 = arith.constant 0 : index
    %c0_7 = arith.constant 0 : index
    %10 = vector.load %arg3[%c0_5, %c0_6, %c0_7] : memref<1x256x4xf32, #tpu.memory_space<vmem>>, vector<1x256x4xf32>
    %11 = vector.shape_cast %10 : vector<1x256x4xf32> to vector<256x4xf32>
    %12 = vector.shape_cast %9 : vector<256x4xf32> to vector<1x256x4xf32>
    tpu.vector_store %arg3[%c0_5, %c0_6, %c0_7], %12 {strides = array<i32>} : memref<1x256x4xf32, #tpu.memory_space<vmem>>, vector<1x256x4xf32>,
    return
  }
  func.func @transform_0(%arg0: i32) -> (i32, i32, i32) {
    %c0_i32 = arith.constant 0 : i32
    %c0_i32_0 = arith.constant 0 : i32
    %c0_i32_1 = arith.constant 0 : i32
    return %arg0, %c0_i32, %c0_i32_0 : i32, i32, i32
  }
  func.func @transform_1(%arg0: i32) -> (i32, i32, i32) {
    %c0_i32 = arith.constant 0 : i32
    %c0_i32_0 = arith.constant 0 : i32
    %c0_i32_1 = arith.constant 0 : i32
    return %arg0, %c0_i32, %c0_i32_0 : i32, i32, i32
  }
  func.func @transform_2(%arg0: i32) -> (i32, i32, i32) {
    %c0_i32 = arith.constant 0 : i32
    %c0_i32_0 = arith.constant 0 : i32
    %c0_i32_1 = arith.constant 0 : i32
    return %arg0, %c0_i32, %c0_i32_0 : i32, i32, i32
  }
}

</mosaic_0001>

<llo_original>
// kernel: _pipeline_impl.2
$region0: #{_pipeline_impl.2}
  #allocation0 [shape = 'u32[]', space=smem, size = 0x4, offset = 0x4, fixed_abs, tag = 'smem constant byte address 0x4 - core index']
  #allocation1 [shape = 'u32[144,128]{1,0:T(1,128)}', space=vmem, size = 0x12000, scoped, tag = 'internal scratch']
  %s0 = inlined_call_operand.hbm [shape: f32[2,4,256], index: 0, kind: input, shape index: {}]
  %s1 = inlined_call_operand.vmem [shape: s32[2,8,256], index: 1, kind: output, shape index: {}]
  %s2 = sld [smem:[#allocation0]]
  $region41: #{_pipeline_impl.2} parent=0
    _
  %s4 = ssub.s32 1, %s2
  %s5 = scalar_select 0, %s4, %s2
  $region1: #{_pipeline_impl.2} parent=0
    #allocation2 [shape = 'u8[8192]{0}', space=vmem, size = 0x2000, scoped, tag = 'input window, operand 0']
    #allocation3 [shape = 's32[2]{0}', space=sflag, size = 0x8, scoped, tag = 'scoped memory for _pipeline_impl.2']
    %6 = vsyncpa [#allocation3], 0
    %s7 = scalar_lea.sflag [#allocation3], 1
    %8 = vsyncpa %s7, 0
    loop: start=0, step=1, limit=4
    $region2: #{_pipeline_impl.2} parent=1 // loop_pre_header
      _
    $region3: #{_pipeline_impl.2} parent=1 // loop_header
      %s10 = sphi 0, %s14
      %p11 = scmp.ge.s32.totalorder %s10, 4
      %s20 = sphi 0, %s22
      %s23 = sphi 0, %s20
      %s24 = sphi 0, %s23
      %s40 = sphi 0, %s24
      %s46 = sphi 0, %s48
      %s49 = sphi 0, %s46
      %s50 = sphi 0, %s49
      %s66 = sphi 0, %s50
    $region4: #{_pipeline_impl.2} parent=1 // loop_header_branch
      %13 = sbr.rel (%p11) target = $region8
    $region5: #{_pipeline_impl.2} parent=1 // loop_body
      %s15 = ssub.s32 %s10, 1
      %s16 = ssub.s32 %s10, 2
      %s17 = sadd.s32 %s10, 1
      %s18 = ssub.s32 %s10, %s17
      %p19 = scmp.eq.s32.totalorder %s18, 0
      %s21 = sadd.s32 %s20, 1
      %s22 = scalar_select %p19, %s20, %s21
      %p25 = pneg %p19
      %p26 = scmp.eq.s32.totalorder %s10, 1
      %p27 = por %p25, %p26
      %p28 = scmp.ne.s32.totalorder %s20, %s23
      %p29 = scmp.eq.s32.totalorder %s10, 0
      %p30 = por %p28, %p29
      %p31 = scmp.ne.s32.totalorder %s20, %s23
      %p32 = scmp.eq.s32.totalorder %s15, 1
      %p33 = por %p31, %p32
      %p34 = scmp.ne.s32.totalorder %s23, %s24
      %p35 = scmp.eq.s32.totalorder %s15, 0
      %p36 = por %p34, %p35
      %p37 = scmp.ne.s32.totalorder %s23, %s24
      %p38 = scmp.eq.s32.totalorder %s16, 1
      %p39 = por %p37, %p38
      %p41 = scmp.ne.s32.totalorder %s24, %s40
      %p42 = scmp.eq.s32.totalorder %s16, 0
      %p43 = por %p41, %p42
      %s44 = ssub.s32 %s10, %s17
      %p45 = scmp.eq.s32.totalorder %s44, 0
      %s47 = sadd.s32 %s46, 1
      %s48 = scalar_select %p45, %s46, %s47
      %p51 = pneg %p45
      %p52 = scmp.eq.s32.totalorder %s10, 1
      %p53 = por %p51, %p52
      %p54 = scmp.ne.s32.totalorder %s46, %s49
      %p55 = scmp.eq.s32.totalorder %s10, 0
      %p56 = por %p54, %p55
      %p57 = scmp.ne.s32.totalorder %s46, %s49
      %p58 = scmp.eq.s32.totalorder %s15, 1
      %p59 = por %p57, %p58
      %p60 = scmp.ne.s32.totalorder %s49, %s50
      %p61 = scmp.eq.s32.totalorder %s15, 0
      %p62 = por %p60, %p61
      %p63 = scmp.ne.s32.totalorder %s49, %s50
      %p64 = scmp.eq.s32.totalorder %s16, 1
      %p65 = por %p63, %p64
      %p67 = scmp.ne.s32.totalorder %s50, %s66
      %p68 = scmp.eq.s32.totalorder %s16, 0
      %p69 = por %p67, %p68
      %p70 = scmp.le.s32.totalorder 1, %s10
      %p71 = scmp.lt.s32.totalorder %s10, 3
      %p72 = pnand %p70, %p71
      %p73 = pneg %p72
      // Predicated region
      $region9: #{_pipeline_impl.2} parent=5 // pred_check
        _
      $region10: #{_pipeline_impl.2} parent=5 // pred_check_branch
        %75 = sbr.rel (%p72) target = $region12
      $region11: #{_pipeline_impl.2} parent=5 // pred_region
        %s76 = ssub.s32 %s10, 1
      $region12: #{_pipeline_impl.2} parent=5 // pred_fallthru
        _
      %p77 = scmp.lt.s32.totalorder %s10, 2
      // Predicated region
      $region13: #{_pipeline_impl.2} parent=5 // pred_check
        %p78 = pneg %p77
      $region14: #{_pipeline_impl.2} parent=5 // pred_check_branch
        %80 = sbr.rel (%p78) target = $region16
      $region15: #{_pipeline_impl.2} parent=5 // pred_region
        // Predicated region
        $region17: #{_pipeline_impl.2} parent=15 // pred_check
          %p81 = pneg %p30
        $region18: #{_pipeline_impl.2} parent=15 // pred_check_branch
          %83 = sbr.rel (%p81) target = $region20
        $region19: #{_pipeline_impl.2} parent=15 // pred_region
          %s84 = sand.u32 %s20, 1
          %s85 = scalar_lea.sflag [#allocation3], %s84
          %s86 = sand.u32 %s20, 1
          %s87 = smul.addr %s86, 8
          %s88 = scalar_lea.vmem [#allocation2], %s87
          %s90 = ssub.s32 128, 128
          %91 = vsyncadd %s85, %s90
          %s92 = smul.addr %s10, 2
          %s93 = smul.addr %s92, 64
          %s94 = scalar_lea.hbm %s0, %s93
          %s96 = sshll.u32 %s88, 4
          %s97 = int_to_ptr.vmem [resolvable:$true] %s96
          %99 = dma.hbm_to_vmem [thread:$0]  %s94, 128, %s97, %s85
        $region20: #{_pipeline_impl.2} parent=15 // pred_fallthru
          _
      $region16: #{_pipeline_impl.2} parent=5 // pred_fallthru
        _
      %p100 = scmp.le.s32.totalorder 1, %s10
      %p101 = scmp.lt.s32.totalorder %s10, 3
      %p102 = pnand %p100, %p101
      %p103 = pneg %p102
      // Predicated region
      $region21: #{_pipeline_impl.2} parent=5 // pred_check
        _
      $region22: #{_pipeline_impl.2} parent=5 // pred_check_branch
        %105 = sbr.rel (%p102) target = $region24
      $region23: #{_pipeline_impl.2} parent=5 // pred_region
        %s106 = ssub.s32 %s10, 1
        %s107 = sand.u32 %s23, 1
        %s108 = scalar_lea.sflag [#allocation3], %s107
        %s109 = sand.u32 %s23, 1
        %s110 = smul.addr %s109, 8
        %s111 = scalar_lea.vmem [#allocation2], %s110
        // Predicated region
        $region25: #{_pipeline_impl.2} parent=23 // pred_check
          %p112 = pneg %p36
        $region26: #{_pipeline_impl.2} parent=23 // pred_check_branch
          %114 = sbr.rel (%p112) target = $region28
        $region27: #{_pipeline_impl.2} parent=23 // pred_region
          %115 = dma.done %s108, 128
        $region28: #{_pipeline_impl.2} parent=23 // pred_fallthru
          _
        %s116 = sand.u32 %s23, 1
        %s117 = scalar_lea.sflag [#allocation3], %s116
        %s118 = sand.u32 %s23, 1
        %s119 = smul.addr %s118, 8
        %s120 = scalar_lea.vmem [#allocation2], %s119
        %p121 = pneg %p36
        %p122 = pneg %p33
        %p123 = pneg %p62
        %p124 = pneg %p59
        %p125 = scmp.lt.s32.totalorder %s15, 1
        %s126 = scalar_select %p125, %s15, 1
        %s127 = smul.addr %s126, 2
        %s128 = smul.addr %s127, 8
        %s129 = scalar_lea.vmem %s1, %s128
        %p130 = scmp.lt.s32.totalorder %s15, 1
        %s131 = scalar_select %p130, %s15, 1
        %s132 = smul.addr %s131, 2
        %s133 = smul.addr %s132, 8
        %s134 = scalar_lea.vmem %s1, %s133
        %v135 = vld [vmem:[%s111] ss:$4 sm:$0x3]
        %s136 = scalar_lea.vmem %s111, 1 [#allocation2]
        %v137 = vld [vmem:[%s136] ss:$4 sm:$0x3]
        %s138 = scalar_lea.vmem %s111, 2 [#allocation2]
        %v139 = vld [vmem:[%s138] ss:$4 sm:$0x3]
        %v140 = vrcp.pop 0.5
        %v141 = vmul.f32 %v135, %v140
        %v142 = vfloor.f32 %v141
        %v143 = vmul.f32 %v137, %v140
        %v144 = vfloor.f32 %v143
        %v145 = vsub.f32 %v139, -2.0
        %v146 = vrcp.pop 4.0
        %v147 = vmul.f32 %v145, %v146
        %v148 = vfloor.f32 %v147
        %vm149 = vcmp.ge.f32.partialorder %v142, 0.0
        %vm150 = vcmp.lt.f32.partialorder %v142, 16.0
        %vm151 = vmand %vm149, %vm150
        %vm152 = vcmp.ge.f32.partialorder %v144, 0.0
        %vm153 = vmand %vm151, %vm152
        %vm154 = vcmp.lt.f32.partialorder %v144, 16.0
        %vm155 = vmand %vm153, %vm154
        %vm156 = vcmp.ge.f32.partialorder %v148, 0.0
        %vm157 = vmand %vm155, %vm156
        %vm158 = vcmp.lt.f32.partialorder %v148, 1.0
        %vm159 = vmand %vm157, %vm158
        %v160 = vcvt.f32.s32.to.zero.pseudo %v142
        %v161 = vcvt.f32.s32.to.zero.pseudo %v144
        %v162 = vcvt.f32.s32.to.zero.pseudo %v148
        %v163 = vmul.u32 %v162, 256
        %v164 = vmul.u32 %v161, 16
        %v165 = vadd.s32 %v163, %v164
        %v166 = vadd.s32 %v165, %v160
        %v167 = vlaneseq
        %vm168 = vcmp.ge.s32.totalorder %v167, 0
        %vm169 = vcmp.lt.s32.totalorder %v167, 256
        %vm170 = vmand %vm168, %vm169
        %171 = vst.msk [vmem:[%s134] ss:$8 sm:$0x3] %vm170, %v160
        %172 = vst.msk [vmem:[%s134] ss:$8 sm:$0x0] %vm170, %v160
        %s173 = scalar_lea.vmem %s134, 1
        %174 = vst.msk [vmem:[%s173] ss:$8 sm:$0x3] %vm170, %v161
        %175 = vst.msk [vmem:[%s173] ss:$8 sm:$0x0] %vm170, %v161
        %s176 = scalar_lea.vmem %s134, 2
        %177 = vst.msk [vmem:[%s176] ss:$8 sm:$0x3] %vm170, %v162
        %178 = vst.msk [vmem:[%s176] ss:$8 sm:$0x0] %vm170, %v162
        %v179 = vsel %vm159, 1, 0
        %s180 = scalar_lea.vmem %s134, 3
        %181 = vst.msk [vmem:[%s180] ss:$8 sm:$0x3] %vm170, %v179
        %182 = vst.msk [vmem:[%s180] ss:$8 sm:$0x0] %vm170, %v179
        %s183 = scalar_lea.vmem %s134, 4
        %184 = vst.msk [vmem:[%s183] ss:$8 sm:$0x3] %vm170, %v166
        %185 = vst.msk [vmem:[%s183] ss:$8 sm:$0x0] %vm170, %v166
        %186 = vst [vmem:[%s134] sm:$0xe0] 0
        %187 = vst [vmem:[%s134 + $0x8] sm:$0xe0] 0
        %p188 = scmp.lt.s32.totalorder %s15, 1
        %s189 = scalar_select %p188, %s15, 1
        %s190 = smul.addr %s189, 2
        %s191 = smul.addr %s190, 8
        %s192 = scalar_lea.vmem %s1, %s191
        // Predicated region
        $region29: #{_pipeline_impl.2} parent=23 // pred_check
          %p193 = pneg %p59
        $region30: #{_pipeline_impl.2} parent=23 // pred_check_branch
          %195 = sbr.rel (%p193) target = $region32
        $region31: #{_pipeline_impl.2} parent=23 // pred_region
          _
        $region32: #{_pipeline_impl.2} parent=23 // pred_fallthru
          _
      $region24: #{_pipeline_impl.2} parent=5 // pred_fallthru
        _
      %p196 = scmp.le.s32.totalorder 2, %s10
      // Predicated region
      $region33: #{_pipeline_impl.2} parent=5 // pred_check
        %p197 = pneg %p196
      $region34: #{_pipeline_impl.2} parent=5 // pred_check_branch
        %199 = sbr.rel (%p197) target = $region36
      $region35: #{_pipeline_impl.2} parent=5 // pred_region
        %s200 = ssub.s32 %s10, 2
        // Predicated region
        $region37: #{_pipeline_impl.2} parent=35 // pred_check
          %p201 = pneg %p65
        $region38: #{_pipeline_impl.2} parent=35 // pred_check_branch
          %203 = sbr.rel (%p201) target = $region40
        $region39: #{_pipeline_impl.2} parent=35 // pred_region
          %p204 = scmp.lt.s32.totalorder %s16, 1
          %s205 = scalar_select %p204, %s16, 1
          %s206 = smul.addr %s205, 2
          %s207 = smul.addr %s206, 8
          %s208 = scalar_lea.vmem %s1, %s207
        $region40: #{_pipeline_impl.2} parent=35 // pred_fallthru
          _
      $region36: #{_pipeline_impl.2} parent=5 // pred_fallthru
        _
    $region6: #{_pipeline_impl.2} parent=1 // loop_footer
      %s14 = sadd.s32 1, %s10
    $region7: #{_pipeline_impl.2} parent=1 // loop_footer_branch
      %9 = sbr.rel target = $region3
    $region8: #{_pipeline_impl.2} parent=1 // loop_exit
      _
    %209 = vsyncpa [#allocation3], 1
    %s210 = scalar_lea.sflag [#allocation3], 1
    %211 = vsyncpa %s210, 1

// kernel: _pipeline_impl.3
$region0: #{_pipeline_impl.3}
  #allocation0 [shape = 'u32[]', space=smem, size = 0x4, offset = 0x4, fixed_abs, tag = 'smem constant byte address 0x4 - core index']
  #allocation1 [shape = 'u32[144,128]{1,0:T(1,128)}', space=vmem, size = 0x12000, scoped, tag = 'internal scratch']
  %s0 = inlined_call_operand.vmem [shape: s32[2,1,256], index: 0, kind: input, shape index: {}]
  %s1 = inlined_call_operand.vmem [shape: f32[2,256,4], index: 1, kind: input, shape index: {}]
  %s2 = inlined_call_operand.vmem [shape: f32[2,256,4], index: 2, kind: output, shape index: {}]
  %s3 = sld [smem:[#allocation0]]
  $region41: #{_pipeline_impl.3} parent=0
    _
  %s5 = ssub.s32 1, %s3
  %s6 = scalar_select 0, %s5, %s3
  loop: start=0, step=1, limit=4
  $region2: #{_pipeline_impl.3} parent=0 // loop_pre_header
    _
  $region3: #{_pipeline_impl.3} parent=0 // loop_header
    %s8 = sphi 0, %s12
    %p9 = scmp.ge.s32.totalorder %s8, 4
    %s18 = sphi 0, %s20
    %s21 = sphi 0, %s18
    %s22 = sphi 0, %s21
    %s38 = sphi 0, %s22
    %s44 = sphi 0, %s46
    %s47 = sphi 0, %s44
    %s48 = sphi 0, %s47
    %s64 = sphi 0, %s48
    %s70 = sphi 0, %s72
    %s73 = sphi 0, %s70
    %s74 = sphi 0, %s73
    %s90 = sphi 0, %s74
  $region4: #{_pipeline_impl.3} parent=0 // loop_header_branch
    %11 = sbr.rel (%p9) target = $region8
  $region5: #{_pipeline_impl.3} parent=0 // loop_body
    %s13 = ssub.s32 %s8, 1
    %s14 = ssub.s32 %s8, 2
    %s15 = sadd.s32 %s8, 1
    %s16 = ssub.s32 %s8, %s15
    %p17 = scmp.eq.s32.totalorder %s16, 0
    %s19 = sadd.s32 %s18, 1
    %s20 = scalar_select %p17, %s18, %s19
    %p23 = pneg %p17
    %p24 = scmp.eq.s32.totalorder %s8, 1
    %p25 = por %p23, %p24
    %p26 = scmp.ne.s32.totalorder %s18, %s21
    %p27 = scmp.eq.s32.totalorder %s8, 0
    %p28 = por %p26, %p27
    %p29 = scmp.ne.s32.totalorder %s18, %s21
    %p30 = scmp.eq.s32.totalorder %s13, 1
    %p31 = por %p29, %p30
    %p32 = scmp.ne.s32.totalorder %s21, %s22
    %p33 = scmp.eq.s32.totalorder %s13, 0
    %p34 = por %p32, %p33
    %p35 = scmp.ne.s32.totalorder %s21, %s22
    %p36 = scmp.eq.s32.totalorder %s14, 1
    %p37 = por %p35, %p36
    %p39 = scmp.ne.s32.totalorder %s22, %s38
    %p40 = scmp.eq.s32.totalorder %s14, 0
    %p41 = por %p39, %p40
    %s42 = ssub.s32 %s8, %s15
    %p43 = scmp.eq.s32.totalorder %s42, 0
    %s45 = sadd.s32 %s44, 1
    %s46 = scalar_select %p43, %s44, %s45
    %p49 = pneg %p43
    %p50 = scmp.eq.s32.totalorder %s8, 1
    %p51 = por %p49, %p50
    %p52 = scmp.ne.s32.totalorder %s44, %s47
    %p53 = scmp.eq.s32.totalorder %s8, 0
    %p54 = por %p52, %p53
    %p55 = scmp.ne.s32.totalorder %s44, %s47
    %p56 = scmp.eq.s32.totalorder %s13, 1
    %p57 = por %p55, %p56
    %p58 = scmp.ne.s32.totalorder %s47, %s48
    %p59 = scmp.eq.s32.totalorder %s13, 0
    %p60 = por %p58, %p59
    %p61 = scmp.ne.s32.totalorder %s47, %s48
    %p62 = scmp.eq.s32.totalorder %s14, 1
    %p63 = por %p61, %p62
    %p65 = scmp.ne.s32.totalorder %s48, %s64
    %p66 = scmp.eq.s32.totalorder %s14, 0
    %p67 = por %p65, %p66
    %s68 = ssub.s32 %s8, %s15
    %p69 = scmp.eq.s32.totalorder %s68, 0
    %s71 = sadd.s32 %s70, 1
    %s72 = scalar_select %p69, %s70, %s71
    %p75 = pneg %p69
    %p76 = scmp.eq.s32.totalorder %s8, 1
    %p77 = por %p75, %p76
    %p78 = scmp.ne.s32.totalorder %s70, %s73
    %p79 = scmp.eq.s32.totalorder %s8, 0
    %p80 = por %p78, %p79
    %p81 = scmp.ne.s32.totalorder %s70, %s73
    %p82 = scmp.eq.s32.totalorder %s13, 1
    %p83 = por %p81, %p82
    %p84 = scmp.ne.s32.totalorder %s73, %s74
    %p85 = scmp.eq.s32.totalorder %s13, 0
    %p86 = por %p84, %p85
    %p87 = scmp.ne.s32.totalorder %s73, %s74
    %p88 = scmp.eq.s32.totalorder %s14, 1
    %p89 = por %p87, %p88
    %p91 = scmp.ne.s32.totalorder %s74, %s90
    %p92 = scmp.eq.s32.totalorder %s14, 0
    %p93 = por %p91, %p92
    %p94 = scmp.le.s32.totalorder 1, %s8
    %p95 = scmp.lt.s32.totalorder %s8, 3
    %p96 = pnand %p94, %p95
    %p97 = pneg %p96
    // Predicated region
    $region9: #{_pipeline_impl.3} parent=5 // pred_check
      _
    $region10: #{_pipeline_impl.3} parent=5 // pred_check_branch
      %99 = sbr.rel (%p96) target = $region12
    $region11: #{_pipeline_impl.3} parent=5 // pred_region
      %s100 = ssub.s32 %s8, 1
    $region12: #{_pipeline_impl.3} parent=5 // pred_fallthru
      _
    %p101 = scmp.lt.s32.totalorder %s8, 2
    // Predicated region
    $region13: #{_pipeline_impl.3} parent=5 // pred_check
      %p102 = pneg %p101
    $region14: #{_pipeline_impl.3} parent=5 // pred_check_branch
      %104 = sbr.rel (%p102) target = $region16
    $region15: #{_pipeline_impl.3} parent=5 // pred_region
      // Predicated region
      $region17: #{_pipeline_impl.3} parent=15 // pred_check
        %p105 = pneg %p28
      $region18: #{_pipeline_impl.3} parent=15 // pred_check_branch
        %107 = sbr.rel (%p105) target = $region20
      $region19: #{_pipeline_impl.3} parent=15 // pred_region
        %p108 = scmp.lt.s32.totalorder %s8, 1
        %s109 = scalar_select %p108, %s8, 1
        %s110 = smul.addr %s109, 2
        %s111 = scalar_lea.vmem %s0, %s110
      $region20: #{_pipeline_impl.3} parent=15 // pred_fallthru
        _
      // Predicated region
      $region21: #{_pipeline_impl.3} parent=15 // pred_check
        %p112 = pneg %p54
      $region22: #{_pipeline_impl.3} parent=15 // pred_check_branch
        %114 = sbr.rel (%p112) target = $region24
      $region23: #{_pipeline_impl.3} parent=15 // pred_region
        %p115 = scmp.lt.s32.totalorder %s8, 1
        %s116 = scalar_select %p115, %s8, 1
        %s117 = smul.addr %s116, 32
        %s118 = smul.addr %s117, 8
        %s119 = scalar_lea.vmem %s1, %s118
      $region24: #{_pipeline_impl.3} parent=15 // pred_fallthru
        _
    $region16: #{_pipeline_impl.3} parent=5 // pred_fallthru
      _
    %p120 = scmp.le.s32.totalorder 1, %s8
    %p121 = scmp.lt.s32.totalorder %s8, 3
    %p122 = pnand %p120, %p121
    %p123 = pneg %p122
    // Predicated region
    $region25: #{_pipeline_impl.3} parent=5 // pred_check
      _
    $region26: #{_pipeline_impl.3} parent=5 // pred_check_branch
      %125 = sbr.rel (%p122) target = $region28
    $region27: #{_pipeline_impl.3} parent=5 // pred_region
      %s126 = ssub.s32 %s8, 1
      %p127 = scmp.lt.s32.totalorder %s13, 1
      %s128 = scalar_select %p127, %s13, 1
      %s129 = smul.addr %s128, 2
      %s130 = scalar_lea.vmem %s0, %s129
      %p131 = pneg %p34
      %p132 = pneg %p31
      %p133 = scmp.lt.s32.totalorder %s13, 1
      %s134 = scalar_select %p133, %s13, 1
      %s135 = smul.addr %s134, 32
      %s136 = smul.addr %s135, 8
      %s137 = scalar_lea.vmem %s1, %s136
      %p138 = pneg %p60
      %p139 = pneg %p57
      %p140 = pneg %p86
      %p141 = pneg %p83
      %p142 = scmp.lt.s32.totalorder %s13, 1
      %s143 = scalar_select %p142, %s13, 1
      %s144 = smul.addr %s143, 32
      %s145 = smul.addr %s144, 8
      %s146 = scalar_lea.vmem %s2, %s145
      %p147 = scmp.lt.s32.totalorder %s13, 1
      %s148 = scalar_select %p147, %s13, 1
      %s149 = smul.addr %s148, 2
      %s150 = scalar_lea.vmem %s0, %s149
      %p151 = scmp.lt.s32.totalorder %s13, 1
      %s152 = scalar_select %p151, %s13, 1
      %s153 = smul.addr %s152, 32
      %s154 = smul.addr %s153, 8
      %s155 = scalar_lea.vmem %s1, %s154
      %p156 = scmp.lt.s32.totalorder %s13, 1
      %s157 = scalar_select %p156, %s13, 1
      %s158 = smul.addr %s157, 32
      %s159 = smul.addr %s158, 8
      %s160 = scalar_lea.vmem %s2, %s159
      %v161 = vld [vmem:[%s150] sm:$0x3]
      %v162 = vlaneseq
      %v163 = vshrl.u32 %v162, 7
      %v164 = vadd.s32 %v163, 8
      %v165 = vadd.s32 %v163, 16
      %v166 = vadd.s32 %v163, 24
      %v167 = vadd.s32 %v163, 32
      %v168 = vadd.s32 %v163, 40
      %v169 = vadd.s32 %v163, 48
      %v170 = vadd.s32 %v163, 56
      %v171 = vadd.s32 %v163, 64
      %v172 = vadd.s32 %v163, 72
      %v173 = vadd.s32 %v163, 80
      %v174 = vadd.s32 %v163, 88
      %v175 = vadd.s32 %v163, 96
      %v176 = vadd.s32 %v163, 104
      %v177 = vadd.s32 %v163, 112
      %v178 = vadd.s32 %v163, 120
      %v179 = vadd.s32 %v163, 128
      %v180 = vadd.s32 %v163, 136
      %v181 = vadd.s32 %v163, 144
      %v182 = vadd.s32 %v163, 152
      %v183 = vadd.s32 %v163, 160
      %v184 = vadd.s32 %v163, 168
      %v185 = vadd.s32 %v163, 176
      %v186 = vadd.s32 %v163, 184
      %v187 = vadd.s32 %v163, 192
      %v188 = vadd.s32 %v163, 200
      %v189 = vadd.s32 %v163, 208
      %v190 = vadd.s32 %v163, 216
      %v191 = vadd.s32 %v163, 224
      %v192 = vadd.s32 %v163, 232
      %v193 = vadd.s32 %v163, 240
      %v194 = vadd.s32 %v163, 248
      %v195 = vlaneseq
      %v196 = vshrl.u32 %v195, 7
      %v197 = vsub.s32 0, %v196
      %v198 = vrot.slane %v161, %v197
      %v199 = vlaneseq
      %v200 = vshrl.u32 %v199, 7
      %v201 = vsub.s32 1, %v200
      %v202 = vrot.slane %v161, %v201
      %vm203 = vcmp.eq.s32.totalorder %v163, %v198
      %vm204 = vcmp.eq.s32.totalorder %v163, %v202
      %vm205 = vcmp.eq.s32.totalorder %v164, %v198
      %vm206 = vcmp.eq.s32.totalorder %v164, %v202
      %vm207 = vcmp.eq.s32.totalorder %v165, %v198
      %vm208 = vcmp.eq.s32.totalorder %v165, %v202
      %vm209 = vcmp.eq.s32.totalorder %v166, %v198
      %vm210 = vcmp.eq.s32.totalorder %v166, %v202
      %vm211 = vcmp.eq.s32.totalorder %v167, %v198
      %vm212 = vcmp.eq.s32.totalorder %v167, %v202
      %vm213 = vcmp.eq.s32.totalorder %v168, %v198
      %vm214 = vcmp.eq.s32.totalorder %v168, %v202
      %vm215 = vcmp.eq.s32.totalorder %v169, %v198
      %vm216 = vcmp.eq.s32.totalorder %v169, %v202
      %vm217 = vcmp.eq.s32.totalorder %v170, %v198
      %vm218 = vcmp.eq.s32.totalorder %v170, %v202
      %vm219 = vcmp.eq.s32.totalorder %v171, %v198
      %vm220 = vcmp.eq.s32.totalorder %v171, %v202
      %vm221 = vcmp.eq.s32.totalorder %v172, %v198
      %vm222 = vcmp.eq.s32.totalorder %v172, %v202
      %vm223 = vcmp.eq.s32.totalorder %v173, %v198
      %vm224 = vcmp.eq.s32.totalorder %v173, %v202
      %vm225 = vcmp.eq.s32.totalorder %v174, %v198
      %vm226 = vcmp.eq.s32.totalorder %v174, %v202
      %vm227 = vcmp.eq.s32.totalorder %v175, %v198
      %vm228 = vcmp.eq.s32.totalorder %v175, %v202
      %vm229 = vcmp.eq.s32.totalorder %v176, %v198
      %vm230 = vcmp.eq.s32.totalorder %v176, %v202
      %vm231 = vcmp.eq.s32.totalorder %v177, %v198
      %vm232 = vcmp.eq.s32.totalorder %v177, %v202
      %vm233 = vcmp.eq.s32.totalorder %v178, %v198
      %vm234 = vcmp.eq.s32.totalorder %v178, %v202
      %vm235 = vcmp.eq.s32.totalorder %v179, %v198
      %vm236 = vcmp.eq.s32.totalorder %v179, %v202
      %vm237 = vcmp.eq.s32.totalorder %v180, %v198
      %vm238 = vcmp.eq.s32.totalorder %v180, %v202
      %vm239 = vcmp.eq.s32.totalorder %v181, %v198
      %vm240 = vcmp.eq.s32.totalorder %v181, %v202
      %vm241 = vcmp.eq.s32.totalorder %v182, %v198
      %vm242 = vcmp.eq.s32.totalorder %v182, %v202
      %vm243 = vcmp.eq.s32.totalorder %v183, %v198
      %vm244 = vcmp.eq.s32.totalorder %v183, %v202
      %vm245 = vcmp.eq.s32.totalorder %v184, %v198
      %vm246 = vcmp.eq.s32.totalorder %v184, %v202
      %vm247 = vcmp.eq.s32.totalorder %v185, %v198
      %vm248 = vcmp.eq.s32.totalorder %v185, %v202
      %vm249 = vcmp.eq.s32.totalorder %v186, %v198
      %vm250 = vcmp.eq.s32.totalorder %v186, %v202
      %vm251 = vcmp.eq.s32.totalorder %v187, %v198
      %vm252 = vcmp.eq.s32.totalorder %v187, %v202
      %vm253 = vcmp.eq.s32.totalorder %v188, %v198
      %vm254 = vcmp.eq.s32.totalorder %v188, %v202
      %vm255 = vcmp.eq.s32.totalorder %v189, %v198
      %vm256 = vcmp.eq.s32.totalorder %v189, %v202
      %vm257 = vcmp.eq.s32.totalorder %v190, %v198
      %vm258 = vcmp.eq.s32.totalorder %v190, %v202
      %vm259 = vcmp.eq.s32.totalorder %v191, %v198
      %vm260 = vcmp.eq.s32.totalorder %v191, %v202
      %vm261 = vcmp.eq.s32.totalorder %v192, %v198
      %vm262 = vcmp.eq.s32.totalorder %v192, %v202
      %vm263 = vcmp.eq.s32.totalorder %v193, %v198
      %vm264 = vcmp.eq.s32.totalorder %v193, %v202
      %vm265 = vcmp.eq.s32.totalorder %v194, %v198
      %vm266 = vcmp.eq.s32.totalorder %v194, %v202
      %v267 = vsel %vm203, 1, 0
      %v268 = vsel %vm204, 1, 0
      %v269 = vsel %vm205, 1, 0
      %v270 = vsel %vm206, 1, 0
      %v271 = vsel %vm207, 1, 0
      %v272 = vsel %vm208, 1, 0
      %v273 = vsel %vm209, 1, 0
      %v274 = vsel %vm210, 1, 0
      %v275 = vsel %vm211, 1, 0
      %v276 = vsel %vm212, 1, 0
      %v277 = vsel %vm213, 1, 0
      %v278 = vsel %vm214, 1, 0
      %v279 = vsel %vm215, 1, 0
      %v280 = vsel %vm216, 1, 0
      %v281 = vsel %vm217, 1, 0
      %v282 = vsel %vm218, 1, 0
      %v283 = vsel %vm219, 1, 0
      %v284 = vsel %vm220, 1, 0
      %v285 = vsel %vm221, 1, 0
      %v286 = vsel %vm222, 1, 0
      %v287 = vsel %vm223, 1, 0
      %v288 = vsel %vm224, 1, 0
      %v289 = vsel %vm225, 1, 0
      %v290 = vsel %vm226, 1, 0
      %v291 = vsel %vm227, 1, 0
      %v292 = vsel %vm228, 1, 0
      %v293 = vsel %vm229, 1, 0
      %v294 = vsel %vm230, 1, 0
      %v295 = vsel %vm231, 1, 0
      %v296 = vsel %vm232, 1, 0
      %v297 = vsel %vm233, 1, 0
      %v298 = vsel %vm234, 1, 0
      %v299 = vsel %vm235, 1, 0
      %v300 = vsel %vm236, 1, 0
      %v301 = vsel %vm237, 1, 0
      %v302 = vsel %vm238, 1, 0
      %v303 = vsel %vm239, 1, 0
      %v304 = vsel %vm240, 1, 0
      %v305 = vsel %vm241, 1, 0
      %v306 = vsel %vm242, 1, 0
      %v307 = vsel %vm243, 1, 0
      %v308 = vsel %vm244, 1, 0
      %v309 = vsel %vm245, 1, 0
      %v310 = vsel %vm246, 1, 0
      %v311 = vsel %vm247, 1, 0
      %v312 = vsel %vm248, 1, 0
      %v313 = vsel %vm249, 1, 0
      %v314 = vsel %vm250, 1, 0
      %v315 = vsel %vm251, 1, 0
      %v316 = vsel %vm252, 1, 0
      %v317 = vsel %vm253, 1, 0
      %v318 = vsel %vm254, 1, 0
      %v319 = vsel %vm255, 1, 0
      %v320 = vsel %vm256, 1, 0
      %v321 = vsel %vm257, 1, 0
      %v322 = vsel %vm258, 1, 0
      %v323 = vsel %vm259, 1, 0
      %v324 = vsel %vm260, 1, 0
      %v325 = vsel %vm261, 1, 0
      %v326 = vsel %vm262, 1, 0
      %v327 = vsel %vm263, 1, 0
      %v328 = vsel %vm264, 1, 0
      %v329 = vsel %vm265, 1, 0
      %v330 = vsel %vm266, 1, 0
      %v331 = vcvt.s32.f32 %v267
      %v332 = vcvt.s32.f32 %v268
      %v333 = vcvt.s32.f32 %v269
      %v334 = vcvt.s32.f32 %v270
      %v335 = vcvt.s32.f32 %v271
      %v336 = vcvt.s32.f32 %v272
      %v337 = vcvt.s32.f32 %v273
      %v338 = vcvt.s32.f32 %v274
      %v339 = vcvt.s32.f32 %v275
      %v340 = vcvt.s32.f32 %v276
      %v341 = vcvt.s32.f32 %v277
      %v342 = vcvt.s32.f32 %v278
      %v343 = vcvt.s32.f32 %v279
      %v344 = vcvt.s32.f32 %v280
      %v345 = vcvt.s32.f32 %v281
      %v346 = vcvt.s32.f32 %v282
      %v347 = vcvt.s32.f32 %v283
      %v348 = vcvt.s32.f32 %v284
      %v349 = vcvt.s32.f32 %v285
      %v350 = vcvt.s32.f32 %v286
      %v351 = vcvt.s32.f32 %v287
      %v352 = vcvt.s32.f32 %v288
      %v353 = vcvt.s32.f32 %v289
      %v354 = vcvt.s32.f32 %v290
      %v355 = vcvt.s32.f32 %v291
      %v356 = vcvt.s32.f32 %v292
      %v357 = vcvt.s32.f32 %v293
      %v358 = vcvt.s32.f32 %v294
      %v359 = vcvt.s32.f32 %v295
      %v360 = vcvt.s32.f32 %v296
      %v361 = vcvt.s32.f32 %v297
      %v362 = vcvt.s32.f32 %v298
      %v363 = vcvt.s32.f32 %v299
      %v364 = vcvt.s32.f32 %v300
      %v365 = vcvt.s32.f32 %v301
      %v366 = vcvt.s32.f32 %v302
      %v367 = vcvt.s32.f32 %v303
      %v368 = vcvt.s32.f32 %v304
      %v369 = vcvt.s32.f32 %v305
      %v370 = vcvt.s32.f32 %v306
      %v371 = vcvt.s32.f32 %v307
      %v372 = vcvt.s32.f32 %v308
      %v373 = vcvt.s32.f32 %v309
      %v374 = vcvt.s32.f32 %v310
      %v375 = vcvt.s32.f32 %v311
      %v376 = vcvt.s32.f32 %v312
      %v377 = vcvt.s32.f32 %v313
      %v378 = vcvt.s32.f32 %v314
      %v379 = vcvt.s32.f32 %v315
      %v380 = vcvt.s32.f32 %v316
      %v381 = vcvt.s32.f32 %v317
      %v382 = vcvt.s32.f32 %v318
      %v383 = vcvt.s32.f32 %v319
      %v384 = vcvt.s32.f32 %v320
      %v385 = vcvt.s32.f32 %v321
      %v386 = vcvt.s32.f32 %v322
      %v387 = vcvt.s32.f32 %v323
      %v388 = vcvt.s32.f32 %v324
      %v389 = vcvt.s32.f32 %v325
      %v390 = vcvt.s32.f32 %v326
      %v391 = vcvt.s32.f32 %v327
      %v392 = vcvt.s32.f32 %v328
      %v393 = vcvt.s32.f32 %v329
      %v394 = vcvt.s32.f32 %v330
      %v395 = vld [vmem:[%s155] sm:$0xff]
      %v396 = vld [vmem:[%s155 + $0x8] sm:$0xff]
      %v397 = vld [vmem:[%s155 + $0x10] sm:$0xff]
      %v398 = vld [vmem:[%s155 + $0x18] sm:$0xff]
      %v399 = vld [vmem:[%s155 + $0x20] sm:$0xff]
      %v400 = vld [vmem:[%s155 + $0x28] sm:$0xff]
      %v401 = vld [vmem:[%s155 + $0x30] sm:$0xff]
      %v402 = vld [vmem:[%s155 + $0x38] sm:$0xff]
      %v403 = vld [vmem:[%s155 + $0x40] sm:$0xff]
      %v404 = vld [vmem:[%s155 + $0x48] sm:$0xff]
      %v405 = vld [vmem:[%s155 + $0x50] sm:$0xff]
      %v406 = vld [vmem:[%s155 + $0x58] sm:$0xff]
      %v407 = vld [vmem:[%s155 + $0x60] sm:$0xff]
      %v408 = vld [vmem:[%s155 + $0x68] sm:$0xff]
      %v409 = vld [vmem:[%s155 + $0x70] sm:$0xff]
      %v410 = vld [vmem:[%s155 + $0x78] sm:$0xff]
      %v411 = vld [vmem:[%s155 + $0x80] sm:$0xff]
      %v412 = vld [vmem:[%s155 + $0x88] sm:$0xff]
      %v413 = vld [vmem:[%s155 + $0x90] sm:$0xff]
      %v414 = vld [vmem:[%s155 + $0x98] sm:$0xff]
      %v415 = vld [vmem:[%s155 + $0xa0] sm:$0xff]
      %v416 = vld [vmem:[%s155 + $0xa8] sm:$0xff]
      %v417 = vld [vmem:[%s155 + $0xb0] sm:$0xff]
      %v418 = vld [vmem:[%s155 + $0xb8] sm:$0xff]
      %v419 = vld [vmem:[%s155 + $0xc0] sm:$0xff]
      %v420 = vld [vmem:[%s155 + $0xc8] sm:$0xff]
      %v421 = vld [vmem:[%s155 + $0xd0] sm:$0xff]
      %v422 = vld [vmem:[%s155 + $0xd8] sm:$0xff]
      %v423 = vld [vmem:[%s155 + $0xe0] sm:$0xff]
      %v424 = vld [vmem:[%s155 + $0xe8] sm:$0xff]
      %v425 = vld [vmem:[%s155 + $0xf0] sm:$0xff]
      %v426 = vld [vmem:[%s155 + $0xf8] sm:$0xff]
      %427 = vmatprep.subr.mxu0 0.0
      %428 = vmatpush1.msra.mxu0 %v410
      %429 = vmatprep.subr.mxu0 0.0
      %430 = vmatpush1.msra.mxu0 %v409
      %431 = vmatprep.subr.mxu0 0.0
      %432 = vmatpush1.msra.mxu0 %v408
      %433 = vmatprep.subr.mxu0 0.0
      %434 = vmatpush1.msra.mxu0 %v407
      %435 = vmatprep.subr.mxu0 0.0
      %436 = vmatpush1.msra.mxu0 %v406
      %437 = vmatprep.subr.mxu0 0.0
      %438 = vmatpush1.msra.mxu0 %v405
      %439 = vmatprep.subr.mxu0 0.0
      %440 = vmatpush1.msra.mxu0 %v404
      %441 = vmatprep.subr.mxu0 0.0
      %442 = vmatpush1.msra.mxu0 %v403
      %443 = vmatprep.subr.mxu0 0.0
      %444 = vmatpush1.msra.mxu0 %v402
      %445 = vmatprep.subr.mxu0 0.0
      %446 = vmatpush1.msra.mxu0 %v401
      %447 = vmatprep.subr.mxu0 0.0
      %448 = vmatpush1.msra.mxu0 %v400
      %449 = vmatprep.subr.mxu0 0.0
      %450 = vmatpush1.msra.mxu0 %v399
      %451 = vmatprep.subr.mxu0 0.0
      %452 = vmatpush1.msra.mxu0 %v398
      %453 = vmatprep.subr.mxu0 0.0
      %454 = vmatpush1.msra.mxu0 %v397
      %455 = vmatprep.subr.mxu0 0.0
      %456 = vmatpush1.msra.mxu0 %v396
      %457 = vmatprep.subr.mxu0 0.0
      %458 = vmatpush1.msra.mxu0 %v395
      %459 = vmatprep.subr.mxu0 0.0
      %460 = vmatpush2.msra.mxu0 %v426
      %461 = vmatprep.subr.mxu0 0.0
      %462 = vmatpush2.msra.mxu0 %v425
      %463 = vmatprep.subr.mxu0 0.0
      %464 = vmatpush2.msra.mxu0 %v424
      %465 = vmatprep.subr.mxu0 0.0
      %466 = vmatpush2.msra.mxu0 %v423
      %467 = vmatprep.subr.mxu0 0.0
      %468 = vmatpush2.msra.mxu0 %v422
      %469 = vmatprep.subr.mxu0 0.0
      %470 = vmatpush2.msra.mxu0 %v421
      %471 = vmatprep.subr.mxu0 0.0
      %472 = vmatpush2.msra.mxu0 %v420
      %473 = vmatprep.subr.mxu0 0.0
      %474 = vmatpush2.msra.mxu0 %v419
      %475 = vmatprep.subr.mxu0 0.0
      %476 = vmatpush2.msra.mxu0 %v418
      %477 = vmatprep.subr.mxu0 0.0
      %478 = vmatpush2.msra.mxu0 %v417
      %479 = vmatprep.subr.mxu0 0.0
      %480 = vmatpush2.msra.mxu0 %v416
      %481 = vmatprep.subr.mxu0 0.0
      %482 = vmatpush2.msra.mxu0 %v415
      %483 = vmatprep.subr.mxu0 0.0
      %484 = vmatpush2.msra.mxu0 %v414
      %485 = vmatprep.subr.mxu0 0.0
      %486 = vmatpush2.msra.mxu0 %v413
      %487 = vmatprep.subr.mxu0 0.0
      %488 = vmatpush2.msra.mxu0 %v412
      %489 = vmatprep.subr.mxu0 0.0
      %490 = vmatpush2.msra.mxu0 %v411
      %491 = vmatprep.mubr.f32.mxu0 %v332
      %492 = vmatmul.mubr.f32.gmra.mxu0 %v331
      %v493 = vpop.f32.mrf.mxu0
      %v494 = vadd.f32 0.0, %v493
      %v495 = vpop.f32.mrf.mxu0
      %496 = vmatprep.mubr.f32.mxu0 %v334
      %497 = vmatmul.mubr.f32.gmra.mxu0 %v333
      %v498 = vpop.f32.mrf.mxu0
      %v499 = vadd.f32 0.0, %v498
      %v500 = vpop.f32.mrf.mxu0
      %501 = vmatprep.mubr.f32.mxu0 %v336
      %502 = vmatmul.mubr.f32.gmra.mxu0 %v335
      %v503 = vpop.f32.mrf.mxu0
      %v504 = vadd.f32 0.0, %v503
      %v505 = vpop.f32.mrf.mxu0
      %506 = vmatprep.mubr.f32.mxu0 %v338
      %507 = vmatmul.mubr.f32.gmra.mxu0 %v337
      %v508 = vpop.f32.mrf.mxu0
      %v509 = vadd.f32 0.0, %v508
      %v510 = vpop.f32.mrf.mxu0
      %511 = vmatprep.mubr.f32.mxu0 %v340
      %512 = vmatmul.mubr.f32.gmra.mxu0 %v339
      %v513 = vpop.f32.mrf.mxu0
      %v514 = vadd.f32 0.0, %v513
      %v515 = vpop.f32.mrf.mxu0
      %516 = vmatprep.mubr.f32.mxu0 %v342
      %517 = vmatmul.mubr.f32.gmra.mxu0 %v341
      %v518 = vpop.f32.mrf.mxu0
      %v519 = vadd.f32 0.0, %v518
      %v520 = vpop.f32.mrf.mxu0
      %521 = vmatprep.mubr.f32.mxu0 %v344
      %522 = vmatmul.mubr.f32.gmra.mxu0 %v343
      %v523 = vpop.f32.mrf.mxu0
      %v524 = vadd.f32 0.0, %v523
      %v525 = vpop.f32.mrf.mxu0
      %526 = vmatprep.mubr.f32.mxu0 %v346
      %527 = vmatmul.mubr.f32.gmra.mxu0 %v345
      %v528 = vpop.f32.mrf.mxu0
      %v529 = vadd.f32 0.0, %v528
      %v530 = vpop.f32.mrf.mxu0
      %531 = vmatprep.mubr.f32.mxu0 %v348
      %532 = vmatmul.mubr.f32.gmra.mxu0 %v347
      %v533 = vpop.f32.mrf.mxu0
      %v534 = vadd.f32 0.0, %v533
      %v535 = vpop.f32.mrf.mxu0
      %536 = vmatprep.mubr.f32.mxu0 %v350
      %537 = vmatmul.mubr.f32.gmra.mxu0 %v349
      %v538 = vpop.f32.mrf.mxu0
      %v539 = vadd.f32 0.0, %v538
      %v540 = vpop.f32.mrf.mxu0
      %541 = vmatprep.mubr.f32.mxu0 %v352
      %542 = vmatmul.mubr.f32.gmra.mxu0 %v351
      %v543 = vpop.f32.mrf.mxu0
      %v544 = vadd.f32 0.0, %v543
      %v545 = vpop.f32.mrf.mxu0
      %546 = vmatprep.mubr.f32.mxu0 %v354
      %547 = vmatmul.mubr.f32.gmra.mxu0 %v353
      %v548 = vpop.f32.mrf.mxu0
      %v549 = vadd.f32 0.0, %v548
      %v550 = vpop.f32.mrf.mxu0
      %551 = vmatprep.mubr.f32.mxu0 %v356
      %552 = vmatmul.mubr.f32.gmra.mxu0 %v355
      %v553 = vpop.f32.mrf.mxu0
      %v554 = vadd.f32 0.0, %v553
      %v555 = vpop.f32.mrf.mxu0
      %556 = vmatprep.mubr.f32.mxu0 %v358
      %557 = vmatmul.mubr.f32.gmra.mxu0 %v357
      %v558 = vpop.f32.mrf.mxu0
      %v559 = vadd.f32 0.0, %v558
      %v560 = vpop.f32.mrf.mxu0
      %561 = vmatprep.mubr.f32.mxu0 %v360
      %562 = vmatmul.mubr.f32.gmra.mxu0 %v359
      %v563 = vpop.f32.mrf.mxu0
      %v564 = vadd.f32 0.0, %v563
      %v565 = vpop.f32.mrf.mxu0
      %566 = vmatprep.mubr.f32.mxu0 %v362
      %567 = vmatmul.mubr.f32.gmra.mxu0 %v361
      %v568 = vpop.f32.mrf.mxu0
      %v569 = vadd.f32 0.0, %v568
      %v570 = vpop.f32.mrf.mxu0
      %571 = vmatprep.mubr.f32.mxu0 %v364
      %572 = vmatmul.mubr.f32.gmra.mxu0 %v363
      %v573 = vpop.f32.mrf.mxu0
      %v574 = vadd.f32 0.0, %v573
      %v575 = vpop.f32.mrf.mxu0
      %576 = vmatprep.mubr.f32.mxu0 %v366
      %577 = vmatmul.mubr.f32.gmra.mxu0 %v365
      %v578 = vpop.f32.mrf.mxu0
      %v579 = vadd.f32 0.0, %v578
      %v580 = vpop.f32.mrf.mxu0
      %581 = vmatprep.mubr.f32.mxu0 %v368
      %582 = vmatmul.mubr.f32.gmra.mxu0 %v367
      %v583 = vpop.f32.mrf.mxu0
      %v584 = vadd.f32 0.0, %v583
      %v585 = vpop.f32.mrf.mxu0
      %586 = vmatprep.mubr.f32.mxu0 %v370
      %587 = vmatmul.mubr.f32.gmra.mxu0 %v369
      %v588 = vpop.f32.mrf.mxu0
      %v589 = vadd.f32 0.0, %v588
      %v590 = vpop.f32.mrf.mxu0
      %591 = vmatprep.mubr.f32.mxu0 %v372
      %592 = vmatmul.mubr.f32.gmra.mxu0 %v371
      %v593 = vpop.f32.mrf.mxu0
      %v594 = vadd.f32 0.0, %v593
      %v595 = vpop.f32.mrf.mxu0
      %596 = vmatprep.mubr.f32.mxu0 %v374
      %597 = vmatmul.mubr.f32.gmra.mxu0 %v373
      %v598 = vpop.f32.mrf.mxu0
      %v599 = vadd.f32 0.0, %v598
      %v600 = vpop.f32.mrf.mxu0
      %601 = vmatprep.mubr.f32.mxu0 %v376
      %602 = vmatmul.mubr.f32.gmra.mxu0 %v375
      %v603 = vpop.f32.mrf.mxu0
      %v604 = vadd.f32 0.0, %v603
      %v605 = vpop.f32.mrf.mxu0
      %606 = vmatprep.mubr.f32.mxu0 %v378
      %607 = vmatmul.mubr.f32.gmra.mxu0 %v377
      %v608 = vpop.f32.mrf.mxu0
      %v609 = vadd.f32 0.0, %v608
      %v610 = vpop.f32.mrf.mxu0
      %611 = vmatprep.mubr.f32.mxu0 %v380
      %612 = vmatmul.mubr.f32.gmra.mxu0 %v379
      %v613 = vpop.f32.mrf.mxu0
      %v614 = vadd.f32 0.0, %v613
      %v615 = vpop.f32.mrf.mxu0
      %616 = vmatprep.mubr.f32.mxu0 %v382
      %617 = vmatmul.mubr.f32.gmra.mxu0 %v381
      %v618 = vpop.f32.mrf.mxu0
      %v619 = vadd.f32 0.0, %v618
      %v620 = vpop.f32.mrf.mxu0
      %621 = vmatprep.mubr.f32.mxu0 %v384
      %622 = vmatmul.mubr.f32.gmra.mxu0 %v383
      %v623 = vpop.f32.mrf.mxu0
      %v624 = vadd.f32 0.0, %v623
      %v625 = vpop.f32.mrf.mxu0
      %626 = vmatprep.mubr.f32.mxu0 %v386
      %627 = vmatmul.mubr.f32.gmra.mxu0 %v385
      %v628 = vpop.f32.mrf.mxu0
      %v629 = vadd.f32 0.0, %v628
      %v630 = vpop.f32.mrf.mxu0
      %631 = vmatprep.mubr.f32.mxu0 %v388
      %632 = vmatmul.mubr.f32.gmra.mxu0 %v387
      %v633 = vpop.f32.mrf.mxu0
      %v634 = vadd.f32 0.0, %v633
      %v635 = vpop.f32.mrf.mxu0
      %636 = vmatprep.mubr.f32.mxu0 %v390
      %637 = vmatmul.mubr.f32.gmra.mxu0 %v389
      %v638 = vpop.f32.mrf.mxu0
      %v639 = vadd.f32 0.0, %v638
      %v640 = vpop.f32.mrf.mxu0
      %641 = vmatprep.mubr.f32.mxu0 %v392
      %642 = vmatmul.mubr.f32.gmra.mxu0 %v391
      %v643 = vpop.f32.mrf.mxu0
      %v644 = vadd.f32 0.0, %v643
      %v645 = vpop.f32.mrf.mxu0
      %646 = vmatprep.mubr.f32.mxu0 %v394
      %647 = vmatmul.mubr.f32.gmra.mxu0 %v393
      %v648 = vpop.f32.mrf.mxu0
      %v649 = vadd.f32 0.0, %v648
      %v650 = vpop.f32.mrf.mxu0
      %651 = vdwg.mxu0
      %vm652 = vcmask 31744
      %653 = vst.msk [vmem:[%s160] sm:$0xff] %vm652, %v494
      %654 = vst.msk [vmem:[%s160 + $0x8] sm:$0xff] %vm652, %v499
      %655 = vst.msk [vmem:[%s160 + $0x10] sm:$0xff] %vm652, %v504
      %656 = vst.msk [vmem:[%s160 + $0x18] sm:$0xff] %vm652, %v509
      %657 = vst.msk [vmem:[%s160 + $0x20] sm:$0xff] %vm652, %v514
      %658 = vst.msk [vmem:[%s160 + $0x28] sm:$0xff] %vm652, %v519
      %659 = vst.msk [vmem:[%s160 + $0x30] sm:$0xff] %vm652, %v524
      %660 = vst.msk [vmem:[%s160 + $0x38] sm:$0xff] %vm652, %v529
      %661 = vst.msk [vmem:[%s160 + $0x40] sm:$0xff] %vm652, %v534
      %662 = vst.msk [vmem:[%s160 + $0x48] sm:$0xff] %vm652, %v539
      %663 = vst.msk [vmem:[%s160 + $0x50] sm:$0xff] %vm652, %v544
      %664 = vst.msk [vmem:[%s160 + $0x58] sm:$0xff] %vm652, %v549
      %665 = vst.msk [vmem:[%s160 + $0x60] sm:$0xff] %vm652, %v554
      %666 = vst.msk [vmem:[%s160 + $0x68] sm:$0xff] %vm652, %v559
      %667 = vst.msk [vmem:[%s160 + $0x70] sm:$0xff] %vm652, %v564
      %668 = vst.msk [vmem:[%s160 + $0x78] sm:$0xff] %vm652, %v569
      %669 = vst.msk [vmem:[%s160 + $0x80] sm:$0xff] %vm652, %v574
      %670 = vst.msk [vmem:[%s160 + $0x88] sm:$0xff] %vm652, %v579
      %671 = vst.msk [vmem:[%s160 + $0x90] sm:$0xff] %vm652, %v584
      %672 = vst.msk [vmem:[%s160 + $0x98] sm:$0xff] %vm652, %v589
      %673 = vst.msk [vmem:[%s160 + $0xa0] sm:$0xff] %vm652, %v594
      %674 = vst.msk [vmem:[%s160 + $0xa8] sm:$0xff] %vm652, %v599
      %675 = vst.msk [vmem:[%s160 + $0xb0] sm:$0xff] %vm652, %v604
      %676 = vst.msk [vmem:[%s160 + $0xb8] sm:$0xff] %vm652, %v609
      %677 = vst.msk [vmem:[%s160 + $0xc0] sm:$0xff] %vm652, %v614
      %678 = vst.msk [vmem:[%s160 + $0xc8] sm:$0xff] %vm652, %v619
      %679 = vst.msk [vmem:[%s160 + $0xd0] sm:$0xff] %vm652, %v624
      %680 = vst.msk [vmem:[%s160 + $0xd8] sm:$0xff] %vm652, %v629
      %681 = vst.msk [vmem:[%s160 + $0xe0] sm:$0xff] %vm652, %v634
      %682 = vst.msk [vmem:[%s160 + $0xe8] sm:$0xff] %vm652, %v639
      %683 = vst.msk [vmem:[%s160 + $0xf0] sm:$0xff] %vm652, %v644
      %684 = vst.msk [vmem:[%s160 + $0xf8] sm:$0xff] %vm652, %v649
      %p685 = scmp.lt.s32.totalorder %s13, 1
      %s686 = scalar_select %p685, %s13, 1
      %s687 = smul.addr %s686, 32
      %s688 = smul.addr %s687, 8
      %s689 = scalar_lea.vmem %s2, %s688
      // Predicated region
      $region29: #{_pipeline_impl.3} parent=27 // pred_check
        %p690 = pneg %p83
      $region30: #{_pipeline_impl.3} parent=27 // pred_check_branch
        %692 = sbr.rel (%p690) target = $region32
      $region31: #{_pipeline_impl.3} parent=27 // pred_region
        _
      $region32: #{_pipeline_impl.3} parent=27 // pred_fallthru
        _
    $region28: #{_pipeline_impl.3} parent=5 // pred_fallthru
      _
    %p693 = scmp.le.s32.totalorder 2, %s8
    // Predicated region
    $region33: #{_pipeline_impl.3} parent=5 // pred_check
      %p694 = pneg %p693
    $region34: #{_pipeline_impl.3} parent=5 // pred_check_branch
      %696 = sbr.rel (%p694) target = $region36
    $region35: #{_pipeline_impl.3} parent=5 // pred_region
      %s697 = ssub.s32 %s8, 2
      // Predicated region
      $region37: #{_pipeline_impl.3} parent=35 // pred_check
        %p698 = pneg %p89
      $region38: #{_pipeline_impl.3} parent=35 // pred_check_branch
        %700 = sbr.rel (%p698) target = $region40
      $region39: #{_pipeline_impl.3} parent=35 // pred_region
        %p701 = scmp.lt.s32.totalorder %s14, 1
        %s702 = scalar_select %p701, %s14, 1
        %s703 = smul.addr %s702, 32
        %s704 = smul.addr %s703, 8
        %s705 = scalar_lea.vmem %s2, %s704
      $region40: #{_pipeline_impl.3} parent=35 // pred_fallthru
        _
    $region36: #{_pipeline_impl.3} parent=5 // pred_fallthru
      _
  $region6: #{_pipeline_impl.3} parent=0 // loop_footer
    %s12 = sadd.s32 1, %s8
  $region7: #{_pipeline_impl.3} parent=0 // loop_footer_branch
    %7 = sbr.rel target = $region3
  $region8: #{_pipeline_impl.3} parent=0 // loop_exit
    _

</llo_original>
